<compile_context>
chip_gen: v7x
topology: tpu7x:2x2x1
jax: 0.10.0
libtpu: 0.0.40
codegen_flags: <defaults>
</compile_context>

<pallas_src>
import jax
import jax.numpy as jnp
import numpy as np
from jax.experimental import pallas as pl
from jax.experimental.pallas import tpu as pltpu


def _round_up(x, m):
    return (x + m - 1) // m * m


# ---------------------------------------------------------------------------
# Kernel
# ---------------------------------------------------------------------------
def _mlp_kernel(x_ref,
                w_in_ref, b_in_ref,
                w_hid_ref, b_hid_ref,
                w_out_ref, b_out_ref,
                o_ref):
    """One (TB, *) batch tile of the fused MLP forward.

    BN is pre-folded into the linear weights/biases, dropout is identity (eval).
    Matmuls run in bf16 on the MXU with fp32 accumulation; elementwise math
    (bias add, ReLU, residual) stays in fp32.
    """
    # input_layer (+ folded BN) -> ReLU -> dropout(identity)
    h = jnp.dot(x_ref[...], w_in_ref[...],
                preferred_element_type=jnp.float32) + b_in_ref[...]
    h = jnp.maximum(h, 0.0)

    # residual hidden blocks (static unroll over the leading layer axis)
    num_hidden = w_hid_ref.shape[0]
    for i in range(num_hidden):
        z = jnp.dot(h.astype(w_hid_ref.dtype), w_hid_ref[i],
                    preferred_element_type=jnp.float32) + b_hid_ref[i]
        z = jnp.maximum(z, 0.0)                     # ReLU (dropout = identity)
        h = z + h                                   # residual connection

    # output head
    out = jnp.dot(h.astype(w_out_ref.dtype), w_out_ref[...],
                  preferred_element_type=jnp.float32) + b_out_ref[...]
    o_ref[...] = out.astype(o_ref.dtype)


# ---------------------------------------------------------------------------
# Wrapper
# ---------------------------------------------------------------------------
def enhanced_mlp_forward(x, folded_params, *, tb=128):
    """x: (B, input_size) float32 -> (B, num_classes) float32."""
    (w_in, b_in, w_hid, b_hid, w_out, b_out, dims) = folded_params
    input_size, hidden_size, num_classes = dims

    B = x.shape[0]
    in_p = w_in.shape[0]
    h_p = w_in.shape[1]
    c_p = w_out.shape[1]
    n_hidden = w_hid.shape[0]

    # Pad the batch to a whole number of tiles; padded rows are zero and are
    # sliced off after the call.
    bp = _round_up(max(B, 1), tb)
    x_p = jnp.zeros((bp, in_p), jnp.bfloat16)
    x_p = x_p.at[:B, :input_size].set(x.astype(jnp.bfloat16))

    grid = (bp // tb,)

    flops = 2 * bp * (in_p * h_p + n_hidden * h_p * h_p + h_p * c_p)
    bytes_accessed = (x_p.size * 2                      # bf16 activations in
                      + (w_in.size + w_hid.size + w_out.size) * 2   # bf16 weights
                      + (b_in.size + b_hid.size + b_out.size) * 4   # fp32 biases
                      + bp * c_p * 4)                   # fp32 output

    out_p = pl.pallas_call(
        _mlp_kernel,
        out_shape=jax.ShapeDtypeStruct((bp, c_p), jnp.float32),
        grid=grid,
        in_specs=[
            pl.BlockSpec((tb, in_p), lambda i: (i, 0)),               # x tile (streamed)
            pl.BlockSpec((in_p, h_p), lambda i: (0, 0)),              # w_in   (resident)
            pl.BlockSpec((1, h_p), lambda i: (0, 0)),                 # b_in
            pl.BlockSpec((n_hidden, h_p, h_p), lambda i: (0, 0, 0)),  # w_hid
            pl.BlockSpec((n_hidden, 1, h_p), lambda i: (0, 0, 0)),    # b_hid
            pl.BlockSpec((h_p, c_p), lambda i: (0, 0)),               # w_out
            pl.BlockSpec((1, c_p), lambda i: (0, 0)),                 # b_out
        ],
        out_specs=pl.BlockSpec((tb, c_p), lambda i: (i, 0)),
        compiler_params=pltpu.CompilerParams(
            dimension_semantics=("parallel",),
            vmem_limit_bytes=64 * 1024 * 1024),
        cost_estimate=pl.CostEstimate(
            flops=flops, transcendentals=0, bytes_accessed=bytes_accessed),
    )(x_p, w_in, b_in, w_hid, b_hid, w_out, b_out)

    return out_p[:B, :num_classes]


# ---------------------------------------------------------------------------
# Parameters: fresh-init (PyTorch defaults), BN fold, lane padding
# ---------------------------------------------------------------------------
def init_params(key, input_size, hidden_size, num_classes, num_layers=3):
    """Deterministic synthetic parameters matching EnhancedMLP.__init__."""
    assert num_layers >= 2, "kernel assumes at least one residual hidden block"
    ks = jax.random.split(key, 2 * (num_layers + 1))

    def linear(kw, kb, fan_in, fan_out):
        # PyTorch nn.Linear default init: U(-1/sqrt(fan_in), 1/sqrt(fan_in))
        bound = 1.0 / np.sqrt(fan_in)
        w = jax.random.uniform(kw, (fan_out, fan_in), jnp.float32, -bound, bound)
        b = jax.random.uniform(kb, (fan_out,), jnp.float32, -bound, bound)
        return w.T, b  # pre-transposed to (in, out)

    def bn(features):
        # gamma=1, beta=0, running_mean=0, running_var=1 (fresh BatchNorm1d)
        return (jnp.ones((features,), jnp.float32),
                jnp.zeros((features,), jnp.float32),
                jnp.zeros((features,), jnp.float32),
                jnp.ones((features,), jnp.float32))

    w_in, b_in = linear(ks[0], ks[1], input_size, hidden_size)
    hidden = []
    for i in range(num_layers - 1):
        w, b = linear(ks[2 + 2 * i], ks[3 + 2 * i], hidden_size, hidden_size)
        hidden.append((w, b, bn(hidden_size)))
    w_out, b_out = linear(ks[-2], ks[-1], hidden_size, num_classes)

    return dict(w_in=w_in, b_in=b_in, bn_in=bn(hidden_size),
                hidden=hidden, w_out=w_out, b_out=b_out)


def fold_and_pad_params(raw, input_size, hidden_size, num_classes,
                        lane=128, eps=1e-5):
    """Fold eval-mode BN into the linear layers, pad features to 128 lanes,
    cast weights to bf16 (biases stay fp32).  Padded weight columns/bias
    entries are zero, so padded hidden lanes stay exactly zero through ReLU
    and the residual path."""
    in_p = _round_up(input_size, lane)
    h_p = _round_up(hidden_size, lane)
    c_p = _round_up(num_classes, lane)

    def fold(w, b, bn_params):
        gamma, beta, rmean, rvar = bn_params
        scale = gamma / jnp.sqrt(rvar + eps)
        return w * scale[None, :], (b - rmean) * scale + beta

    def pad_w(w, rows, cols):
        return jnp.zeros((rows, cols), jnp.float32).at[:w.shape[0], :w.shape[1]].set(w)

    def pad_b(b, cols):
        return jnp.zeros((1, cols), jnp.float32).at[0, :b.shape[0]].set(b)

    w_in, b_in = fold(raw["w_in"], raw["b_in"], raw["bn_in"])
    w_in = pad_w(w_in, in_p, h_p).astype(jnp.bfloat16)
    b_in = pad_b(b_in, h_p)

    w_hs, b_hs = [], []
    for (w, b, bnp) in raw["hidden"]:
        wf, bf = fold(w, b, bnp)
        w_hs.append(pad_w(wf, h_p, h_p).astype(jnp.bfloat16))
        b_hs.append(pad_b(bf, h_p))
    w_hid = jnp.stack(w_hs)   # (num_layers-1, H_P, H_P) bf16
    b_hid = jnp.stack(b_hs)   # (num_layers-1, 1, H_P)   fp32

    w_out = pad_w(raw["w_out"], h_p, c_p).astype(jnp.bfloat16)
    b_out = pad_b(raw["b_out"], c_p)

    dims = (input_size, hidden_size, num_classes)
    return (w_in, b_in, w_hid, b_hid, w_out, b_out, dims)


# ---------------------------------------------------------------------------
# References
# ---------------------------------------------------------------------------
def reference_forward_bf16(x, folded_params):
    """Pure-JAX mirror of the kernel math (same bf16 casts, fp32 accumulation)."""
    (w_in, b_in, w_hid, b_hid, w_out, b_out, dims) = folded_params
    input_size, _, num_classes = dims
    B = x.shape[0]
    in_p = w_in.shape[0]
    xp = jnp.zeros((B, in_p), jnp.bfloat16).at[:, :input_size].set(x.astype(jnp.bfloat16))
    h = jnp.dot(xp, w_in, preferred_element_type=jnp.float32) + b_in
    h = jnp.maximum(h, 0.0)
    for i in range(w_hid.shape[0]):
        z = jnp.dot(h.astype(jnp.bfloat16), w_hid[i],
                    preferred_element_type=jnp.float32) + b_hid[i]
        h = jnp.maximum(z, 0.0) + h
    out = jnp.dot(h.astype(jnp.bfloat16), w_out,
                  preferred_element_type=jnp.float32) + b_out
    return out[:, :num_classes]


def reference_forward_fp32(x, raw, eps=1e-5):
    """Full-precision eval-mode PyTorch-equivalent forward."""
    def bn_apply(h, bnp):
        gamma, beta, rmean, rvar = bnp
        return (h - rmean) / jnp.sqrt(rvar + eps) * gamma + beta
    h = jnp.maximum(bn_apply(x @ raw["w_in"] + raw["b_in"], raw["bn_in"]), 0.0)
    for (w, b, bnp) in raw["hidden"]:
        z = jnp.maximum(bn_apply(h @ w + b, bnp), 0.0)
        h = z + h
    return h @ raw["w_out"] + raw["b_out"]


# ---------------------------------------------------------------------------
if __name__ == "__main__":
    B, input_size, hidden_size, num_classes, num_layers = 16, 16, 32, 8, 3

    key = jax.random.PRNGKey(0)
    kx, kp = jax.random.split(key)
    x = jax.random.normal(kx, (B, input_size), jnp.float32)

    raw = init_params(kp, input_size, hidden_size, num_classes, num_layers)
    folded = fold_and_pad_params(raw, input_size, hidden_size, num_classes)

    out = enhanced_mlp_forward(x, folded, tb=128)
    out = jax.block_until_ready(out)

    # Tight check against a bf16-mirrored reference (same casts as the kernel).
    ref_bf16 = reference_forward_bf16(x, folded)
    np.testing.assert_allclose(np.asarray(out), np.asarray(ref_bf16),
                               rtol=1e-4, atol=1e-4)

    # Loose check against the full-precision eval-mode module semantics.
    ref_fp32 = reference_forward_fp32(x, raw)
    np.testing.assert_allclose(np.asarray(out), np.asarray(ref_fp32),
                               rtol=5e-2, atol=5e-2)

    print("KERNEL_OK")
</pallas_src>

<mosaic_0001>
module attributes {stable_mosaic.version = 11 : i64} {
  func.func @_mlp_kernel(%arg0: i32, %arg1: memref<128x128xbf16, #tpu.memory_space<vmem>>, %arg2: memref<128x128xbf16, #tpu.memory_space<vmem>>, %arg3: memref<1x128xf32, #tpu.memory_space<vmem>>, %arg4: memref<2x128x128xbf16, #tpu.memory_space<vmem>>, %arg5: memref<2x1x128xf32, #tpu.memory_space<vmem>>, %arg6: memref<128x128xbf16, #tpu.memory_space<vmem>>, %arg7: memref<1x128xf32, #tpu.memory_space<vmem>>, %arg8: memref<128x128xf32, #tpu.memory_space<vmem>>) attributes {dimension_semantics = [#tpu.dimension_semantics<parallel>], iteration_bounds = array<i64: 1>, scalar_prefetch = 0 : i64, scratch_operands = 0 : i64, tpu.core_type = #tpu.core_type<tc>, window_params = [{transform_indices = @transform_0, window_bounds = array<i64: 128, 128>}, {pipeline_mode = #tpu.pipeline_mode<synchronous>, transform_indices = @transform_1, window_bounds = array<i64: 128, 128>}, {pipeline_mode = #tpu.pipeline_mode<synchronous>, transform_indices = @transform_2, window_bounds = array<i64: 1, 128>}, {pipeline_mode = #tpu.pipeline_mode<synchronous>, transform_indices = @transform_3, window_bounds = array<i64: 2, 128, 128>}, {pipeline_mode = #tpu.pipeline_mode<synchronous>, transform_indices = @transform_4, window_bounds = array<i64: 2, 1, 128>}, {pipeline_mode = #tpu.pipeline_mode<synchronous>, transform_indices = @transform_5, window_bounds = array<i64: 128, 128>}, {pipeline_mode = #tpu.pipeline_mode<synchronous>, transform_indices = @transform_6, window_bounds = array<i64: 1, 128>}, {transform_indices = @transform_7, window_bounds = array<i64: 128, 128>}]} {
    %c0 = arith.constant 0 : index
    %c0_0 = arith.constant 0 : index
    %0 = vector.load %arg1[%c0, %c0_0] : memref<128x128xbf16, #tpu.memory_space<vmem>>, vector<128x128xbf16>
    %c0_1 = arith.constant 0 : index
    %c0_2 = arith.constant 0 : index
    %1 = vector.load %arg2[%c0_1, %c0_2] : memref<128x128xbf16, #tpu.memory_space<vmem>>, vector<128x128xbf16>
    %cst = arith.constant dense<0.000000e+00> : vector<128x128xf32>
    %2 = tpu.matmul %0, %1, %cst {dimension_numbers = #tpu.dot_dimension_numbers<[1], [0], [0], [1], [0, 0, 1, 1], [], []>} : vector<128x128xbf16>, vector<128x128xbf16>, vector<128x128xf32> -> vector<128x128xf32>
    %c0_3 = arith.constant 0 : index
    %c0_4 = arith.constant 0 : index
    %3 = vector.load %arg3[%c0_3, %c0_4] : memref<1x128xf32, #tpu.memory_space<vmem>>, vector<1x128xf32>
    %4 = vector.broadcast %3 : vector<1x128xf32> to vector<128x128xf32>
    %5 = arith.addf %2, %4 : vector<128x128xf32>
    %cst_5 = arith.constant 0.000000e+00 : f32
    %6 = vector.broadcast %cst_5 : f32 to vector<128x128xf32>
    %7 = arith.maximumf %5, %6 : vector<128x128xf32>
    %8 = arith.truncf %7 : vector<128x128xf32> to vector<128x128xbf16>
    %c0_6 = arith.constant 0 : index
    %c0_7 = arith.constant 0 : index
    %c0_8 = arith.constant 0 : index
    %9 = vector.load %arg4[%c0_6, %c0_7, %c0_8] : memref<2x128x128xbf16, #tpu.memory_space<vmem>>, vector<1x128x128xbf16>
    %10 = vector.shape_cast %9 : vector<1x128x128xbf16> to vector<128x128xbf16>
    %cst_9 = arith.constant dense<0.000000e+00> : vector<128x128xf32>
    %11 = tpu.matmul %8, %10, %cst_9 {dimension_numbers = #tpu.dot_dimension_numbers<[1], [0], [0], [1], [0, 0, 1, 1], [], []>} : vector<128x128xbf16>, vector<128x128xbf16>, vector<128x128xf32> -> vector<128x128xf32>
    %c0_10 = arith.constant 0 : index
    %c0_11 = arith.constant 0 : index
    %c0_12 = arith.constant 0 : index
    %12 = vector.load %arg5[%c0_10, %c0_11, %c0_12] : memref<2x1x128xf32, #tpu.memory_space<vmem>>, vector<1x1x128xf32>
    %13 = vector.shape_cast %12 : vector<1x1x128xf32> to vector<1x128xf32>
    %14 = vector.broadcast %13 : vector<1x128xf32> to vector<128x128xf32>
    %15 = arith.addf %11, %14 : vector<128x128xf32>
    %cst_13 = arith.constant 0.000000e+00 : f32
    %16 = vector.broadcast %cst_13 : f32 to vector<128x128xf32>
    %17 = arith.maximumf %15, %16 : vector<128x128xf32>
    %18 = arith.addf %17, %7 : vector<128x128xf32>
    %19 = arith.truncf %18 : vector<128x128xf32> to vector<128x128xbf16>
    %c1 = arith.constant 1 : index
    %c0_14 = arith.constant 0 : index
    %c0_15 = arith.constant 0 : index
    %20 = vector.load %arg4[%c1, %c0_14, %c0_15] : memref<2x128x128xbf16, #tpu.memory_space<vmem>>, vector<1x128x128xbf16>
    %21 = vector.shape_cast %20 : vector<1x128x128xbf16> to vector<128x128xbf16>
    %cst_16 = arith.constant dense<0.000000e+00> : vector<128x128xf32>
    %22 = tpu.matmul %19, %21, %cst_16 {dimension_numbers = #tpu.dot_dimension_numbers<[1], [0], [0], [1], [0, 0, 1, 1], [], []>} : vector<128x128xbf16>, vector<128x128xbf16>, vector<128x128xf32> -> vector<128x128xf32>
    %c1_17 = arith.constant 1 : index
    %c0_18 = arith.constant 0 : index
    %c0_19 = arith.constant 0 : index
    %23 = vector.load %arg5[%c1_17, %c0_18, %c0_19] : memref<2x1x128xf32, #tpu.memory_space<vmem>>, vector<1x1x128xf32>
    %24 = vector.shape_cast %23 : vector<1x1x128xf32> to vector<1x128xf32>
    %25 = vector.broadcast %24 : vector<1x128xf32> to vector<128x128xf32>
    %26 = arith.addf %22, %25 : vector<128x128xf32>
    %cst_20 = arith.constant 0.000000e+00 : f32
    %27 = vector.broadcast %cst_20 : f32 to vector<128x128xf32>
    %28 = arith.maximumf %26, %27 : vector<128x128xf32>
    %29 = arith.addf %28, %18 : vector<128x128xf32>
    %30 = arith.truncf %29 : vector<128x128xf32> to vector<128x128xbf16>
    %c0_21 = arith.constant 0 : index
    %c0_22 = arith.constant 0 : index
    %31 = vector.load %arg6[%c0_21, %c0_22] : memref<128x128xbf16, #tpu.memory_space<vmem>>, vector<128x128xbf16>
    %cst_23 = arith.constant dense<0.000000e+00> : vector<128x128xf32>
    %32 = tpu.matmul %30, %31, %cst_23 {dimension_numbers = #tpu.dot_dimension_numbers<[1], [0], [0], [1], [0, 0, 1, 1], [], []>} : vector<128x128xbf16>, vector<128x128xbf16>, vector<128x128xf32> -> vector<128x128xf32>
    %c0_24 = arith.constant 0 : index
    %c0_25 = arith.constant 0 : index
    %33 = vector.load %arg7[%c0_24, %c0_25] : memref<1x128xf32, #tpu.memory_space<vmem>>, vector<1x128xf32>
    %34 = vector.broadcast %33 : vector<1x128xf32> to vector<128x128xf32>
    %35 = arith.addf %32, %34 : vector<128x128xf32>
    %c0_26 = arith.constant 0 : index
    %c0_27 = arith.constant 0 : index
    %36 = vector.load %arg8[%c0_26, %c0_27] : memref<128x128xf32, #tpu.memory_space<vmem>>, vector<128x128xf32>
    tpu.vector_store %arg8[%c0_26, %c0_27], %35 {strides = array<i32>} : memref<128x128xf32, #tpu.memory_space<vmem>>, vector<128x128xf32>,
    return
  }
  func.func @transform_0(%arg0: i32) -> (i32, i32) {
    %c0_i32 = arith.constant 0 : i32
    %c0_i32_0 = arith.constant 0 : i32
    return %arg0, %c0_i32 : i32, i32
  }
  func.func @transform_1(%arg0: i32) -> (i32, i32) {
    %c0_i32 = arith.constant 0 : i32
    %c0_i32_0 = arith.constant 0 : i32
    %c0_i32_1 = arith.constant 0 : i32
    return %c0_i32, %c0_i32_0 : i32, i32
  }
  func.func @transform_2(%arg0: i32) -> (i32, i32) {
    %c0_i32 = arith.constant 0 : i32
    %c0_i32_0 = arith.constant 0 : i32
    %c0_i32_1 = arith.constant 0 : i32
    return %c0_i32, %c0_i32_0 : i32, i32
  }
  func.func @transform_3(%arg0: i32) -> (i32, i32, i32) {
    %c0_i32 = arith.constant 0 : i32
    %c0_i32_0 = arith.constant 0 : i32
    %c0_i32_1 = arith.constant 0 : i32
    %c0_i32_2 = arith.constant 0 : i32
    return %c0_i32, %c0_i32_0, %c0_i32_1 : i32, i32, i32
  }
  func.func @transform_4(%arg0: i32) -> (i32, i32, i32) {
    %c0_i32 = arith.constant 0 : i32
    %c0_i32_0 = arith.constant 0 : i32
    %c0_i32_1 = arith.constant 0 : i32
    %c0_i32_2 = arith.constant 0 : i32
    return %c0_i32, %c0_i32_0, %c0_i32_1 : i32, i32, i32
  }
  func.func @transform_5(%arg0: i32) -> (i32, i32) {
    %c0_i32 = arith.constant 0 : i32
    %c0_i32_0 = arith.constant 0 : i32
    %c0_i32_1 = arith.constant 0 : i32
    return %c0_i32, %c0_i32_0 : i32, i32
  }
  func.func @transform_6(%arg0: i32) -> (i32, i32) {
    %c0_i32 = arith.constant 0 : i32
    %c0_i32_0 = arith.constant 0 : i32
    %c0_i32_1 = arith.constant 0 : i32
    return %c0_i32, %c0_i32_0 : i32, i32
  }
  func.func @transform_7(%arg0: i32) -> (i32, i32) {
    %c0_i32 = arith.constant 0 : i32
    %c0_i32_0 = arith.constant 0 : i32
    return %arg0, %c0_i32 : i32, i32
  }
}

</mosaic_0001>

<llo_original>
// kernel: tpu_custom_call.1
$region0: #{tpu_custom_call.1}
  #allocation0 [shape = 'u32[]', space=smem, size = 0x4, offset = 0x4, fixed_abs, tag = 'smem constant byte address 0x4 - core index']
  #allocation1 [shape = 'u32[144,128]{1,0:T(1,128)}', space=vmem, size = 0x12000, scoped, tag = 'internal scratch']
  %s0 = inlined_call_operand.hbm [shape: bf16[128,128], index: 0, kind: input, shape index: {}]
  %s1 = inlined_call_operand.hbm [shape: bf16[128,128], index: 1, kind: input, shape index: {}]
  %s2 = inlined_call_operand.hbm [shape: f32[1,128], index: 2, kind: input, shape index: {}]
  %s3 = inlined_call_operand.hbm [shape: bf16[2,128,128], index: 3, kind: input, shape index: {}]
  %s4 = inlined_call_operand.hbm [shape: f32[2,1,128], index: 4, kind: input, shape index: {}]
  %s5 = inlined_call_operand.hbm [shape: bf16[128,128], index: 5, kind: input, shape index: {}]
  %s6 = inlined_call_operand.hbm [shape: f32[1,128], index: 6, kind: input, shape index: {}]
  %s7 = inlined_call_operand.hbm [shape: f32[128,128], index: 7, kind: output, shape index: {}]
  %s8 = sld [smem:[#allocation0]]
  $region66: #{tpu_custom_call.1} parent=0
    _
  %s10 = ssub.s32 1, %s8
  %s11 = scalar_select 0, %s10, %s8
  $region1: #{tpu_custom_call.1} parent=0
    #allocation2 [shape = 'u8[32768]{0}', space=vmem, size = 0x8000, scoped, tag = 'input window, operand 0, single buffered']
    #allocation3 [shape = 's32[1]{0}', space=sflag, size = 0x4, scoped, tag = 'scoped memory for tpu_custom_call.1']
    #allocation4 [shape = 's32[1]{0}', space=sflag, size = 0x4, scoped, tag = 'scoped memory for tpu_custom_call.1']
    #allocation5 [shape = 'u8[32768]{0}', space=vmem, size = 0x8000, scoped, tag = 'input window, operand 1, single buffered']
    #allocation6 [shape = 's32[1]{0}', space=sflag, size = 0x4, scoped, tag = 'scoped memory for tpu_custom_call.1']
    #allocation7 [shape = 'u8[512]{0}', space=vmem, size = 0x400, scoped, tag = 'input window, operand 2, single buffered']
    #allocation8 [shape = 'u8[65536]{0}', space=vmem, size = 0x10000, scoped, tag = 'input window, operand 3, single buffered']
    #allocation9 [shape = 's32[1]{0}', space=sflag, size = 0x4, scoped, tag = 'scoped memory for tpu_custom_call.1']
    #allocation10 [shape = 'u8[1024]{0}', space=vmem, size = 0x400, scoped, tag = 'input window, operand 4, single buffered']
    #allocation11 [shape = 'u8[32768]{0}', space=vmem, size = 0x8000, scoped, tag = 'input window, operand 5, single buffered']
    #allocation12 [shape = 's32[1]{0}', space=sflag, size = 0x4, scoped, tag = 'scoped memory for tpu_custom_call.1']
    #allocation13 [shape = 'u8[512]{0}', space=vmem, size = 0x400, scoped, tag = 'input window, operand 6, single buffered']
    #allocation14 [shape = 'u8[65536]{0}', space=vmem, size = 0x10000, scoped, tag = 'output window, operand 0, single buffered']
    %12 = vsyncpa [#allocation3], 0
    %13 = vsyncpa [#allocation6], 0
    %14 = vsyncpa [#allocation9], 0
    %15 = vsyncpa [#allocation12], 0
    %16 = vsyncpa [#allocation4], 0
    // Predicated region
    $region2: #{tpu_custom_call.1} parent=1 // pred_check
      _
    $region3: #{tpu_custom_call.1} parent=1 // pred_check_branch
      %18 = sbr.rel (0) target = $region5
    $region4: #{tpu_custom_call.1} parent=1 // pred_region
      %s20 = ssub.s32 1024, 1024
      %21 = vsyncadd [#allocation3], %s20
      %s22 = sshll.u32 [#allocation2], 4
      %s23 = int_to_ptr.vmem [resolvable:$true] %s22
      %28 = dma.hbm_to_vmem [thread:$0]  %s0, 1024, %s23, [#allocation3], 64, 64, 4
    $region5: #{tpu_custom_call.1} parent=1 // pred_fallthru
      _
    // Predicated region
    $region6: #{tpu_custom_call.1} parent=1 // pred_check
      _
    $region7: #{tpu_custom_call.1} parent=1 // pred_check_branch
      %30 = sbr.rel (0) target = $region9
    $region8: #{tpu_custom_call.1} parent=1 // pred_region
      %s32 = ssub.s32 1024, 1024
      %33 = vsyncadd [#allocation6], %s32
      %s34 = sshll.u32 [#allocation5], 4
      %s35 = int_to_ptr.vmem [resolvable:$true] %s34
      %40 = dma.hbm_to_vmem [thread:$0]  %s1, 1024, %s35, [#allocation6], 64, 64, 4
    $region9: #{tpu_custom_call.1} parent=1 // pred_fallthru
      _
    // Predicated region
    $region10: #{tpu_custom_call.1} parent=1 // pred_check
      _
    $region11: #{tpu_custom_call.1} parent=1 // pred_check_branch
      %42 = sbr.rel (0) target = $region13
    $region12: #{tpu_custom_call.1} parent=1 // pred_region
      %s44 = ssub.s32 16, 16
      %45 = vsyncadd [#allocation6], %s44
      %s47 = sshll.u32 [#allocation7], 4
      %s48 = int_to_ptr.vmem [resolvable:$true] %s47
      %50 = dma.hbm_to_vmem [thread:$0]  %s2, 16, %s48, [#allocation6]
    $region13: #{tpu_custom_call.1} parent=1 // pred_fallthru
      _
    // Predicated region
    $region14: #{tpu_custom_call.1} parent=1 // pred_check
      _
    $region15: #{tpu_custom_call.1} parent=1 // pred_check_branch
      %52 = sbr.rel (0) target = $region17
    $region16: #{tpu_custom_call.1} parent=1 // pred_region
      %s54 = ssub.s32 2048, 2048
      %55 = vsyncadd [#allocation9], %s54
      %s56 = sshll.u32 [#allocation8], 4
      %s57 = int_to_ptr.vmem [resolvable:$true] %s56
      %62 = dma.hbm_to_vmem [thread:$0]  %s3, 2048, %s57, [#allocation9], 64, 64, 4
    $region17: #{tpu_custom_call.1} parent=1 // pred_fallthru
      _
    // Predicated region
    $region18: #{tpu_custom_call.1} parent=1 // pred_check
      _
    $region19: #{tpu_custom_call.1} parent=1 // pred_check_branch
      %64 = sbr.rel (0) target = $region21
    $region20: #{tpu_custom_call.1} parent=1 // pred_region
      %s66 = ssub.s32 32, 32
      %67 = vsyncadd [#allocation9], %s66
      %s68 = sshll.u32 [#allocation10], 4
      %s69 = int_to_ptr.vmem [resolvable:$true] %s68
      %74 = dma.hbm_to_vmem [thread:$0]  %s4, 32, %s69, [#allocation9], 16, 16, 1
    $region21: #{tpu_custom_call.1} parent=1 // pred_fallthru
      _
    // Predicated region
    $region22: #{tpu_custom_call.1} parent=1 // pred_check
      _
    $region23: #{tpu_custom_call.1} parent=1 // pred_check_branch
      %76 = sbr.rel (0) target = $region25
    $region24: #{tpu_custom_call.1} parent=1 // pred_region
      %s78 = ssub.s32 1024, 1024
      %79 = vsyncadd [#allocation12], %s78
      %s80 = sshll.u32 [#allocation11], 4
      %s81 = int_to_ptr.vmem [resolvable:$true] %s80
      %86 = dma.hbm_to_vmem [thread:$0]  %s5, 1024, %s81, [#allocation12], 64, 64, 4
    $region25: #{tpu_custom_call.1} parent=1 // pred_fallthru
      _
    // Predicated region
    $region26: #{tpu_custom_call.1} parent=1 // pred_check
      _
    $region27: #{tpu_custom_call.1} parent=1 // pred_check_branch
      %88 = sbr.rel (0) target = $region29
    $region28: #{tpu_custom_call.1} parent=1 // pred_region
      %s90 = ssub.s32 16, 16
      %91 = vsyncadd [#allocation12], %s90
      %s93 = sshll.u32 [#allocation13], 4
      %s94 = int_to_ptr.vmem [resolvable:$true] %s93
      %96 = dma.hbm_to_vmem [thread:$0]  %s6, 16, %s94, [#allocation12]
    $region29: #{tpu_custom_call.1} parent=1 // pred_fallthru
      _
    // Predicated region
    $region30: #{tpu_custom_call.1} parent=1 // pred_check
      _
    $region31: #{tpu_custom_call.1} parent=1 // pred_check_branch
      %98 = sbr.rel (0) target = $region33
    $region32: #{tpu_custom_call.1} parent=1 // pred_region
      %99 = dma.done [#allocation3], 1024
    $region33: #{tpu_custom_call.1} parent=1 // pred_fallthru
      _
    // Predicated region
    $region34: #{tpu_custom_call.1} parent=1 // pred_check
      _
    $region35: #{tpu_custom_call.1} parent=1 // pred_check_branch
      %101 = sbr.rel (0) target = $region37
    $region36: #{tpu_custom_call.1} parent=1 // pred_region
      %102 = dma.done [#allocation6], 1024
    $region37: #{tpu_custom_call.1} parent=1 // pred_fallthru
      _
    // Predicated region
    $region38: #{tpu_custom_call.1} parent=1 // pred_check
      _
    $region39: #{tpu_custom_call.1} parent=1 // pred_check_branch
      %104 = sbr.rel (0) target = $region41
    $region40: #{tpu_custom_call.1} parent=1 // pred_region
      %105 = dma.done [#allocation6], 16
    $region41: #{tpu_custom_call.1} parent=1 // pred_fallthru
      _
    // Predicated region
    $region42: #{tpu_custom_call.1} parent=1 // pred_check
      _
    $region43: #{tpu_custom_call.1} parent=1 // pred_check_branch
      %107 = sbr.rel (0) target = $region45
    $region44: #{tpu_custom_call.1} parent=1 // pred_region
      %108 = dma.done [#allocation9], 2048
    $region45: #{tpu_custom_call.1} parent=1 // pred_fallthru
      _
    // Predicated region
    $region46: #{tpu_custom_call.1} parent=1 // pred_check
      _
    $region47: #{tpu_custom_call.1} parent=1 // pred_check_branch
      %110 = sbr.rel (0) target = $region49
    $region48: #{tpu_custom_call.1} parent=1 // pred_region
      %111 = dma.done [#allocation9], 32
    $region49: #{tpu_custom_call.1} parent=1 // pred_fallthru
      _
    // Predicated region
    $region50: #{tpu_custom_call.1} parent=1 // pred_check
      _
    $region51: #{tpu_custom_call.1} parent=1 // pred_check_branch
      %113 = sbr.rel (0) target = $region53
    $region52: #{tpu_custom_call.1} parent=1 // pred_region
      %114 = dma.done [#allocation12], 1024
    $region53: #{tpu_custom_call.1} parent=1 // pred_fallthru
      _
    // Predicated region
    $region54: #{tpu_custom_call.1} parent=1 // pred_check
      _
    $region55: #{tpu_custom_call.1} parent=1 // pred_check_branch
      %116 = sbr.rel (0) target = $region57
    $region56: #{tpu_custom_call.1} parent=1 // pred_region
      %117 = dma.done [#allocation12], 16
    $region57: #{tpu_custom_call.1} parent=1 // pred_fallthru
      _
    %v119 = vld [vmem:[#allocation2] sm:$0xf]
    %v120 = vld [vmem:[#allocation2 + $0x4] sm:$0xf]
    %v121 = vld [vmem:[#allocation2 + $0x8] sm:$0xf]
    %v122 = vld [vmem:[#allocation2 + $0xc] sm:$0xf]
    %v123 = vld [vmem:[#allocation2 + $0x10] sm:$0xf]
    %v124 = vld [vmem:[#allocation2 + $0x14] sm:$0xf]
    %v125 = vld [vmem:[#allocation2 + $0x18] sm:$0xf]
    %v126 = vld [vmem:[#allocation2 + $0x1c] sm:$0xf]
    %v127 = vld [vmem:[#allocation2 + $0x20] sm:$0xf]
    %v128 = vld [vmem:[#allocation2 + $0x24] sm:$0xf]
    %v129 = vld [vmem:[#allocation2 + $0x28] sm:$0xf]
    %v130 = vld [vmem:[#allocation2 + $0x2c] sm:$0xf]
    %v131 = vld [vmem:[#allocation2 + $0x30] sm:$0xf]
    %v132 = vld [vmem:[#allocation2 + $0x34] sm:$0xf]
    %v133 = vld [vmem:[#allocation2 + $0x38] sm:$0xf]
    %v134 = vld [vmem:[#allocation2 + $0x3c] sm:$0xf]
    %v135 = vld [vmem:[#allocation5] sm:$0xf]
    %v136 = vld [vmem:[#allocation5 + $0x4] sm:$0xf]
    %v137 = vld [vmem:[#allocation5 + $0x8] sm:$0xf]
    %v138 = vld [vmem:[#allocation5 + $0xc] sm:$0xf]
    %v139 = vld [vmem:[#allocation5 + $0x10] sm:$0xf]
    %v140 = vld [vmem:[#allocation5 + $0x14] sm:$0xf]
    %v141 = vld [vmem:[#allocation5 + $0x18] sm:$0xf]
    %v142 = vld [vmem:[#allocation5 + $0x1c] sm:$0xf]
    %v143 = vld [vmem:[#allocation5 + $0x20] sm:$0xf]
    %v144 = vld [vmem:[#allocation5 + $0x24] sm:$0xf]
    %v145 = vld [vmem:[#allocation5 + $0x28] sm:$0xf]
    %v146 = vld [vmem:[#allocation5 + $0x2c] sm:$0xf]
    %v147 = vld [vmem:[#allocation5 + $0x30] sm:$0xf]
    %v148 = vld [vmem:[#allocation5 + $0x34] sm:$0xf]
    %v149 = vld [vmem:[#allocation5 + $0x38] sm:$0xf]
    %v150 = vld [vmem:[#allocation5 + $0x3c] sm:$0xf]
    %v151 = vld [vmem:[#allocation7] sm:$0x1]
    %v153 = vlaneseq
    %v154 = vshrl.u32 %v153, 7
    %v155 = vsub.s32 0, %v154
    %v156 = vrot.slane %v151, %v155
    %v174 = vunpack.c.l.b16 %v119
    %v175 = vunpack.c.l.b16 %v120
    %v176 = vunpack.c.l.b16 %v121
    %v177 = vunpack.c.l.b16 %v122
    %v178 = vunpack.c.l.b16 %v123
    %v179 = vunpack.c.l.b16 %v124
    %v180 = vunpack.c.l.b16 %v125
    %v181 = vunpack.c.l.b16 %v126
    %v182 = vunpack.c.l.b16 %v127
    %v183 = vunpack.c.l.b16 %v128
    %v184 = vunpack.c.l.b16 %v129
    %v185 = vunpack.c.l.b16 %v130
    %v186 = vunpack.c.l.b16 %v131
    %v187 = vunpack.c.l.b16 %v132
    %v188 = vunpack.c.l.b16 %v133
    %v189 = vunpack.c.l.b16 %v134
    %v190 = vpack.c.b16 %v175, %v174
    %v191 = vpack.c.b16 %v177, %v176
    %v192 = vpack.c.b16 %v179, %v178
    %v193 = vpack.c.b16 %v181, %v180
    %v194 = vpack.c.b16 %v183, %v182
    %v195 = vpack.c.b16 %v185, %v184
    %v196 = vpack.c.b16 %v187, %v186
    %v197 = vpack.c.b16 %v189, %v188
    %v222 = vunpack.c.l.b16 %v135
    %v223 = vunpack.c.l.b16 %v136
    %v224 = vunpack.c.l.b16 %v137
    %v225 = vunpack.c.l.b16 %v138
    %v226 = vunpack.c.l.b16 %v139
    %v227 = vunpack.c.l.b16 %v140
    %v228 = vunpack.c.l.b16 %v141
    %v229 = vunpack.c.l.b16 %v142
    %v230 = vunpack.c.l.b16 %v143
    %v231 = vunpack.c.l.b16 %v144
    %v232 = vunpack.c.l.b16 %v145
    %v233 = vunpack.c.l.b16 %v146
    %v234 = vunpack.c.l.b16 %v147
    %v235 = vunpack.c.l.b16 %v148
    %v236 = vunpack.c.l.b16 %v149
    %v237 = vunpack.c.l.b16 %v150
    %v238 = vpack.c.b16 %v223, %v222
    %v239 = vpack.c.b16 %v225, %v224
    %v240 = vpack.c.b16 %v227, %v226
    %v241 = vpack.c.b16 %v229, %v228
    %v242 = vpack.c.b16 %v231, %v230
    %v243 = vpack.c.b16 %v233, %v232
    %v244 = vpack.c.b16 %v235, %v234
    %v245 = vpack.c.b16 %v237, %v236
    %254 = vmatprep.subr.bf16.mxu0 0
    %255 = vmatpush1.bf16.msra.mxu0 %v238
    %256 = vmatprep.subr.bf16.mxu0 0
    %257 = vmatpush1.bf16.msra.mxu0 %v239
    %258 = vmatprep.subr.bf16.mxu0 0
    %259 = vmatpush1.bf16.msra.mxu0 %v240
    %260 = vmatprep.subr.bf16.mxu0 0
    %261 = vmatpush1.bf16.msra.mxu0 %v241
    %262 = vmatprep.subr.bf16.mxu0 0
    %263 = vmatpush1.bf16.msra.mxu0 %v242
    %264 = vmatprep.subr.bf16.mxu0 0
    %265 = vmatpush1.bf16.msra.mxu0 %v243
    %266 = vmatprep.subr.bf16.mxu0 0
    %267 = vmatpush1.bf16.msra.mxu0 %v244
    %268 = vmatprep.subr.bf16.mxu0 0
    %269 = vmatpush1.bf16.msra.mxu0 %v245
    %270 = vmatprep.subr.bf16.mxu0 0
    %271 = vmatpush1.bf16.msra.mxu0 0
    %272 = vmatprep.subr.bf16.mxu0 0
    %273 = vmatpush1.bf16.msra.mxu0 0
    %274 = vmatprep.subr.bf16.mxu0 0
    %275 = vmatpush1.bf16.msra.mxu0 0
    %276 = vmatprep.subr.bf16.mxu0 0
    %277 = vmatpush1.bf16.msra.mxu0 0
    %278 = vmatprep.subr.bf16.mxu0 0
    %279 = vmatpush1.bf16.msra.mxu0 0
    %280 = vmatprep.subr.bf16.mxu0 0
    %281 = vmatpush1.bf16.msra.mxu0 0
    %282 = vmatprep.subr.bf16.mxu0 0
    %283 = vmatpush1.bf16.msra.mxu0 0
    %284 = vmatprep.subr.bf16.mxu0 0
    %285 = vmatpush1.bf16.msra.mxu0 0
    %286 = vmatprep.mubr.bf16.mxu0 0
    %287 = vmatmul.mubr.bf16.gmra.mrb[0].mxu0 %v190
    %v288 = vpop.f32.mrb[0].mxu0
    %v289 = vadd.f32 %v156, %v288
    %v290 = vpop.f32.mrb[0].mxu0
    %v291 = vpop.f32.mrb[0].mxu0
    %v292 = vadd.f32 %v156, %v291
    %v293 = vpop.f32.mrb[0].mxu0
    %294 = vmatprep.mubr.bf16.mxu0 0
    %295 = vmatmul.mubr.bf16.gmra.mrb[0].mxu0 %v191
    %v296 = vpop.f32.mrb[0].mxu0
    %v297 = vadd.f32 %v156, %v296
    %v298 = vpop.f32.mrb[0].mxu0
    %v299 = vpop.f32.mrb[0].mxu0
    %v300 = vadd.f32 %v156, %v299
    %v301 = vpop.f32.mrb[0].mxu0
    %302 = vmatprep.mubr.bf16.mxu0 0
    %303 = vmatmul.mubr.bf16.gmra.mrb[0].mxu0 %v192
    %v304 = vpop.f32.mrb[0].mxu0
    %v305 = vadd.f32 %v156, %v304
    %v306 = vpop.f32.mrb[0].mxu0
    %v307 = vpop.f32.mrb[0].mxu0
    %v308 = vadd.f32 %v156, %v307
    %v309 = vpop.f32.mrb[0].mxu0
    %310 = vmatprep.mubr.bf16.mxu0 0
    %311 = vmatmul.mubr.bf16.gmra.mrb[0].mxu0 %v193
    %v312 = vpop.f32.mrb[0].mxu0
    %v313 = vadd.f32 %v156, %v312
    %v314 = vpop.f32.mrb[0].mxu0
    %v315 = vpop.f32.mrb[0].mxu0
    %v316 = vadd.f32 %v156, %v315
    %v317 = vpop.f32.mrb[0].mxu0
    %318 = vmatprep.mubr.bf16.mxu0 0
    %319 = vmatmul.mubr.bf16.gmra.mrb[0].mxu0 %v194
    %v320 = vpop.f32.mrb[0].mxu0
    %v321 = vadd.f32 %v156, %v320
    %v322 = vpop.f32.mrb[0].mxu0
    %v323 = vpop.f32.mrb[0].mxu0
    %v324 = vadd.f32 %v156, %v323
    %v325 = vpop.f32.mrb[0].mxu0
    %326 = vmatprep.mubr.bf16.mxu0 0
    %327 = vmatmul.mubr.bf16.gmra.mrb[0].mxu0 %v195
    %v328 = vpop.f32.mrb[0].mxu0
    %v329 = vadd.f32 %v156, %v328
    %v330 = vpop.f32.mrb[0].mxu0
    %v331 = vpop.f32.mrb[0].mxu0
    %v332 = vadd.f32 %v156, %v331
    %v333 = vpop.f32.mrb[0].mxu0
    %334 = vmatprep.mubr.bf16.mxu0 0
    %335 = vmatmul.mubr.bf16.gmra.mrb[0].mxu0 %v196
    %v336 = vpop.f32.mrb[0].mxu0
    %v337 = vadd.f32 %v156, %v336
    %v338 = vpop.f32.mrb[0].mxu0
    %v339 = vpop.f32.mrb[0].mxu0
    %v340 = vadd.f32 %v156, %v339
    %v341 = vpop.f32.mrb[0].mxu0
    %342 = vmatprep.mubr.bf16.mxu0 0
    %343 = vmatmul.mubr.bf16.gmra.mrb[0].mxu0 %v197
    %v344 = vpop.f32.mrb[0].mxu0
    %v345 = vadd.f32 %v156, %v344
    %v346 = vpop.f32.mrb[0].mxu0
    %v347 = vpop.f32.mrb[0].mxu0
    %v348 = vadd.f32 %v156, %v347
    %v349 = vpop.f32.mrb[0].mxu0
    %350 = vdwg.mxu0
    %v351 = vmax.f32 %v289, 0.0
    %v352 = vmax.f32 %v292, 0.0
    %v353 = vmax.f32 %v297, 0.0
    %v354 = vmax.f32 %v300, 0.0
    %v355 = vmax.f32 %v305, 0.0
    %v356 = vmax.f32 %v308, 0.0
    %v357 = vmax.f32 %v313, 0.0
    %v358 = vmax.f32 %v316, 0.0
    %v359 = vmax.f32 %v321, 0.0
    %v360 = vmax.f32 %v324, 0.0
    %v361 = vmax.f32 %v329, 0.0
    %v362 = vmax.f32 %v332, 0.0
    %v363 = vmax.f32 %v337, 0.0
    %v364 = vmax.f32 %v340, 0.0
    %v365 = vmax.f32 %v345, 0.0
    %v366 = vmax.f32 %v348, 0.0
    %v367 = vpack.c.bf16 %v352, %v351
    %v368 = vpack.c.bf16 %v354, %v353
    %v369 = vpack.c.bf16 %v356, %v355
    %v370 = vpack.c.bf16 %v358, %v357
    %v371 = vpack.c.bf16 %v360, %v359
    %v372 = vpack.c.bf16 %v362, %v361
    %v373 = vpack.c.bf16 %v364, %v363
    %v374 = vpack.c.bf16 %v366, %v365
    %v375 = vld [vmem:[#allocation8] sm:$0xf]
    %v376 = vld [vmem:[#allocation8 + $0x4] sm:$0xf]
    %v377 = vld [vmem:[#allocation8 + $0x8] sm:$0xf]
    %v378 = vld [vmem:[#allocation8 + $0xc] sm:$0xf]
    %v379 = vld [vmem:[#allocation8 + $0x10] sm:$0xf]
    %v380 = vld [vmem:[#allocation8 + $0x14] sm:$0xf]
    %v381 = vld [vmem:[#allocation8 + $0x18] sm:$0xf]
    %v382 = vld [vmem:[#allocation8 + $0x1c] sm:$0xf]
    %v383 = vld [vmem:[#allocation8 + $0x20] sm:$0xf]
    %v384 = vld [vmem:[#allocation8 + $0x24] sm:$0xf]
    %v385 = vld [vmem:[#allocation8 + $0x28] sm:$0xf]
    %v386 = vld [vmem:[#allocation8 + $0x2c] sm:$0xf]
    %v387 = vld [vmem:[#allocation8 + $0x30] sm:$0xf]
    %v388 = vld [vmem:[#allocation8 + $0x34] sm:$0xf]
    %v389 = vld [vmem:[#allocation8 + $0x38] sm:$0xf]
    %v390 = vld [vmem:[#allocation8 + $0x3c] sm:$0xf]
    %v391 = vld [vmem:[#allocation10] sm:$0x1]
    %v393 = vlaneseq
    %v394 = vshrl.u32 %v393, 7
    %v395 = vsub.s32 0, %v394
    %v396 = vrot.slane %v391, %v395
    %v414 = vunpack.c.l.b16 %v375
    %v415 = vunpack.c.l.b16 %v376
    %v416 = vunpack.c.l.b16 %v377
    %v417 = vunpack.c.l.b16 %v378
    %v418 = vunpack.c.l.b16 %v379
    %v419 = vunpack.c.l.b16 %v380
    %v420 = vunpack.c.l.b16 %v381
    %v421 = vunpack.c.l.b16 %v382
    %v422 = vunpack.c.l.b16 %v383
    %v423 = vunpack.c.l.b16 %v384
    %v424 = vunpack.c.l.b16 %v385
    %v425 = vunpack.c.l.b16 %v386
    %v426 = vunpack.c.l.b16 %v387
    %v427 = vunpack.c.l.b16 %v388
    %v428 = vunpack.c.l.b16 %v389
    %v429 = vunpack.c.l.b16 %v390
    %v430 = vpack.c.b16 %v415, %v414
    %v431 = vpack.c.b16 %v417, %v416
    %v432 = vpack.c.b16 %v419, %v418
    %v433 = vpack.c.b16 %v421, %v420
    %v434 = vpack.c.b16 %v423, %v422
    %v435 = vpack.c.b16 %v425, %v424
    %v436 = vpack.c.b16 %v427, %v426
    %v437 = vpack.c.b16 %v429, %v428
    %446 = vmatprep.subr.bf16.mxu0 0
    %447 = vmatpush1.bf16.msra.mxu0 %v430
    %448 = vmatprep.subr.bf16.mxu0 0
    %449 = vmatpush1.bf16.msra.mxu0 %v431
    %450 = vmatprep.subr.bf16.mxu0 0
    %451 = vmatpush1.bf16.msra.mxu0 %v432
    %452 = vmatprep.subr.bf16.mxu0 0
    %453 = vmatpush1.bf16.msra.mxu0 %v433
    %454 = vmatprep.subr.bf16.mxu0 0
    %455 = vmatpush1.bf16.msra.mxu0 %v434
    %456 = vmatprep.subr.bf16.mxu0 0
    %457 = vmatpush1.bf16.msra.mxu0 %v435
    %458 = vmatprep.subr.bf16.mxu0 0
    %459 = vmatpush1.bf16.msra.mxu0 %v436
    %460 = vmatprep.subr.bf16.mxu0 0
    %461 = vmatpush1.bf16.msra.mxu0 %v437
    %462 = vmatprep.subr.bf16.mxu0 0
    %463 = vmatpush1.bf16.msra.mxu0 0
    %464 = vmatprep.subr.bf16.mxu0 0
    %465 = vmatpush1.bf16.msra.mxu0 0
    %466 = vmatprep.subr.bf16.mxu0 0
    %467 = vmatpush1.bf16.msra.mxu0 0
    %468 = vmatprep.subr.bf16.mxu0 0
    %469 = vmatpush1.bf16.msra.mxu0 0
    %470 = vmatprep.subr.bf16.mxu0 0
    %471 = vmatpush1.bf16.msra.mxu0 0
    %472 = vmatprep.subr.bf16.mxu0 0
    %473 = vmatpush1.bf16.msra.mxu0 0
    %474 = vmatprep.subr.bf16.mxu0 0
    %475 = vmatpush1.bf16.msra.mxu0 0
    %476 = vmatprep.subr.bf16.mxu0 0
    %477 = vmatpush1.bf16.msra.mxu0 0
    %478 = vmatprep.mubr.bf16.mxu0 0
    %479 = vmatmul.mubr.bf16.gmra.mrb[0].mxu0 %v367
    %v480 = vpop.f32.mrb[0].mxu0
    %v481 = vadd.f32 %v396, %v480
    %v482 = vpop.f32.mrb[0].mxu0
    %v483 = vpop.f32.mrb[0].mxu0
    %v484 = vadd.f32 %v396, %v483
    %v485 = vpop.f32.mrb[0].mxu0
    %486 = vmatprep.mubr.bf16.mxu0 0
    %487 = vmatmul.mubr.bf16.gmra.mrb[0].mxu0 %v368
    %v488 = vpop.f32.mrb[0].mxu0
    %v489 = vadd.f32 %v396, %v488
    %v490 = vpop.f32.mrb[0].mxu0
    %v491 = vpop.f32.mrb[0].mxu0
    %v492 = vadd.f32 %v396, %v491
    %v493 = vpop.f32.mrb[0].mxu0
    %494 = vmatprep.mubr.bf16.mxu0 0
    %495 = vmatmul.mubr.bf16.gmra.mrb[0].mxu0 %v369
    %v496 = vpop.f32.mrb[0].mxu0
    %v497 = vadd.f32 %v396, %v496
    %v498 = vpop.f32.mrb[0].mxu0
    %v499 = vpop.f32.mrb[0].mxu0
    %v500 = vadd.f32 %v396, %v499
    %v501 = vpop.f32.mrb[0].mxu0
    %502 = vmatprep.mubr.bf16.mxu0 0
    %503 = vmatmul.mubr.bf16.gmra.mrb[0].mxu0 %v370
    %v504 = vpop.f32.mrb[0].mxu0
    %v505 = vadd.f32 %v396, %v504
    %v506 = vpop.f32.mrb[0].mxu0
    %v507 = vpop.f32.mrb[0].mxu0
    %v508 = vadd.f32 %v396, %v507
    %v509 = vpop.f32.mrb[0].mxu0
    %510 = vmatprep.mubr.bf16.mxu0 0
    %511 = vmatmul.mubr.bf16.gmra.mrb[0].mxu0 %v371
    %v512 = vpop.f32.mrb[0].mxu0
    %v513 = vadd.f32 %v396, %v512
    %v514 = vpop.f32.mrb[0].mxu0
    %v515 = vpop.f32.mrb[0].mxu0
    %v516 = vadd.f32 %v396, %v515
    %v517 = vpop.f32.mrb[0].mxu0
    %518 = vmatprep.mubr.bf16.mxu0 0
    %519 = vmatmul.mubr.bf16.gmra.mrb[0].mxu0 %v372
    %v520 = vpop.f32.mrb[0].mxu0
    %v521 = vadd.f32 %v396, %v520
    %v522 = vpop.f32.mrb[0].mxu0
    %v523 = vpop.f32.mrb[0].mxu0
    %v524 = vadd.f32 %v396, %v523
    %v525 = vpop.f32.mrb[0].mxu0
    %526 = vmatprep.mubr.bf16.mxu0 0
    %527 = vmatmul.mubr.bf16.gmra.mrb[0].mxu0 %v373
    %v528 = vpop.f32.mrb[0].mxu0
    %v529 = vadd.f32 %v396, %v528
    %v530 = vpop.f32.mrb[0].mxu0
    %v531 = vpop.f32.mrb[0].mxu0
    %v532 = vadd.f32 %v396, %v531
    %v533 = vpop.f32.mrb[0].mxu0
    %534 = vmatprep.mubr.bf16.mxu0 0
    %535 = vmatmul.mubr.bf16.gmra.mrb[0].mxu0 %v374
    %v536 = vpop.f32.mrb[0].mxu0
    %v537 = vadd.f32 %v396, %v536
    %v538 = vpop.f32.mrb[0].mxu0
    %v539 = vpop.f32.mrb[0].mxu0
    %v540 = vadd.f32 %v396, %v539
    %v541 = vpop.f32.mrb[0].mxu0
    %542 = vdwg.mxu0
    %v543 = vmax.f32 %v481, 0.0
    %v544 = vmax.f32 %v484, 0.0
    %v545 = vmax.f32 %v489, 0.0
    %v546 = vmax.f32 %v492, 0.0
    %v547 = vmax.f32 %v497, 0.0
    %v548 = vmax.f32 %v500, 0.0
    %v549 = vmax.f32 %v505, 0.0
    %v550 = vmax.f32 %v508, 0.0
    %v551 = vmax.f32 %v513, 0.0
    %v552 = vmax.f32 %v516, 0.0
    %v553 = vmax.f32 %v521, 0.0
    %v554 = vmax.f32 %v524, 0.0
    %v555 = vmax.f32 %v529, 0.0
    %v556 = vmax.f32 %v532, 0.0
    %v557 = vmax.f32 %v537, 0.0
    %v558 = vmax.f32 %v540, 0.0
    %v559 = vadd.f32 %v543, %v351
    %v560 = vadd.f32 %v544, %v352
    %v561 = vadd.f32 %v545, %v353
    %v562 = vadd.f32 %v546, %v354
    %v563 = vadd.f32 %v547, %v355
    %v564 = vadd.f32 %v548, %v356
    %v565 = vadd.f32 %v549, %v357
    %v566 = vadd.f32 %v550, %v358
    %v567 = vadd.f32 %v551, %v359
    %v568 = vadd.f32 %v552, %v360
    %v569 = vadd.f32 %v553, %v361
    %v570 = vadd.f32 %v554, %v362
    %v571 = vadd.f32 %v555, %v363
    %v572 = vadd.f32 %v556, %v364
    %v573 = vadd.f32 %v557, %v365
    %v574 = vadd.f32 %v558, %v366
    %v575 = vpack.c.bf16 %v560, %v559
    %v576 = vpack.c.bf16 %v562, %v561
    %v577 = vpack.c.bf16 %v564, %v563
    %v578 = vpack.c.bf16 %v566, %v565
    %v579 = vpack.c.bf16 %v568, %v567
    %v580 = vpack.c.bf16 %v570, %v569
    %v581 = vpack.c.bf16 %v572, %v571
    %v582 = vpack.c.bf16 %v574, %v573
    %s583 = scalar_lea.vmem [#allocation8], 64
    %v584 = vld [vmem:[%s583] sm:$0xf]
    %v585 = vld [vmem:[%s583 + $0x4] sm:$0xf]
    %v586 = vld [vmem:[%s583 + $0x8] sm:$0xf]
    %v587 = vld [vmem:[%s583 + $0xc] sm:$0xf]
    %v588 = vld [vmem:[%s583 + $0x10] sm:$0xf]
    %v589 = vld [vmem:[%s583 + $0x14] sm:$0xf]
    %v590 = vld [vmem:[%s583 + $0x18] sm:$0xf]
    %v591 = vld [vmem:[%s583 + $0x1c] sm:$0xf]
    %v592 = vld [vmem:[%s583 + $0x20] sm:$0xf]
    %v593 = vld [vmem:[%s583 + $0x24] sm:$0xf]
    %v594 = vld [vmem:[%s583 + $0x28] sm:$0xf]
    %v595 = vld [vmem:[%s583 + $0x2c] sm:$0xf]
    %v596 = vld [vmem:[%s583 + $0x30] sm:$0xf]
    %v597 = vld [vmem:[%s583 + $0x34] sm:$0xf]
    %v598 = vld [vmem:[%s583 + $0x38] sm:$0xf]
    %v599 = vld [vmem:[%s583 + $0x3c] sm:$0xf]
    %s600 = scalar_lea.vmem [#allocation10], 1
    %v601 = vld [vmem:[%s600] sm:$0x1]
    %v603 = vlaneseq
    %v604 = vshrl.u32 %v603, 7
    %v605 = vsub.s32 0, %v604
    %v606 = vrot.slane %v601, %v605
    %v624 = vunpack.c.l.b16 %v584
    %v625 = vunpack.c.l.b16 %v585
    %v626 = vunpack.c.l.b16 %v586
    %v627 = vunpack.c.l.b16 %v587
    %v628 = vunpack.c.l.b16 %v588
    %v629 = vunpack.c.l.b16 %v589
    %v630 = vunpack.c.l.b16 %v590
    %v631 = vunpack.c.l.b16 %v591
    %v632 = vunpack.c.l.b16 %v592
    %v633 = vunpack.c.l.b16 %v593
    %v634 = vunpack.c.l.b16 %v594
    %v635 = vunpack.c.l.b16 %v595
    %v636 = vunpack.c.l.b16 %v596
    %v637 = vunpack.c.l.b16 %v597
    %v638 = vunpack.c.l.b16 %v598
    %v639 = vunpack.c.l.b16 %v599
    %v640 = vpack.c.b16 %v625, %v624
    %v641 = vpack.c.b16 %v627, %v626
    %v642 = vpack.c.b16 %v629, %v628
    %v643 = vpack.c.b16 %v631, %v630
    %v644 = vpack.c.b16 %v633, %v632
    %v645 = vpack.c.b16 %v635, %v634
    %v646 = vpack.c.b16 %v637, %v636
    %v647 = vpack.c.b16 %v639, %v638
    %656 = vmatprep.subr.bf16.mxu0 0
    %657 = vmatpush1.bf16.msra.mxu0 %v640
    %658 = vmatprep.subr.bf16.mxu0 0
    %659 = vmatpush1.bf16.msra.mxu0 %v641
    %660 = vmatprep.subr.bf16.mxu0 0
    %661 = vmatpush1.bf16.msra.mxu0 %v642
    %662 = vmatprep.subr.bf16.mxu0 0
    %663 = vmatpush1.bf16.msra.mxu0 %v643
    %664 = vmatprep.subr.bf16.mxu0 0
    %665 = vmatpush1.bf16.msra.mxu0 %v644
    %666 = vmatprep.subr.bf16.mxu0 0
    %667 = vmatpush1.bf16.msra.mxu0 %v645
    %668 = vmatprep.subr.bf16.mxu0 0
    %669 = vmatpush1.bf16.msra.mxu0 %v646
    %670 = vmatprep.subr.bf16.mxu0 0
    %671 = vmatpush1.bf16.msra.mxu0 %v647
    %672 = vmatprep.subr.bf16.mxu0 0
    %673 = vmatpush1.bf16.msra.mxu0 0
    %674 = vmatprep.subr.bf16.mxu0 0
    %675 = vmatpush1.bf16.msra.mxu0 0
    %676 = vmatprep.subr.bf16.mxu0 0
    %677 = vmatpush1.bf16.msra.mxu0 0
    %678 = vmatprep.subr.bf16.mxu0 0
    %679 = vmatpush1.bf16.msra.mxu0 0
    %680 = vmatprep.subr.bf16.mxu0 0
    %681 = vmatpush1.bf16.msra.mxu0 0
    %682 = vmatprep.subr.bf16.mxu0 0
    %683 = vmatpush1.bf16.msra.mxu0 0
    %684 = vmatprep.subr.bf16.mxu0 0
    %685 = vmatpush1.bf16.msra.mxu0 0
    %686 = vmatprep.subr.bf16.mxu0 0
    %687 = vmatpush1.bf16.msra.mxu0 0
    %688 = vmatprep.mubr.bf16.mxu0 0
    %689 = vmatmul.mubr.bf16.gmra.mrb[0].mxu0 %v575
    %v690 = vpop.f32.mrb[0].mxu0
    %v691 = vadd.f32 %v606, %v690
    %v692 = vpop.f32.mrb[0].mxu0
    %v693 = vpop.f32.mrb[0].mxu0
    %v694 = vadd.f32 %v606, %v693
    %v695 = vpop.f32.mrb[0].mxu0
    %696 = vmatprep.mubr.bf16.mxu0 0
    %697 = vmatmul.mubr.bf16.gmra.mrb[0].mxu0 %v576
    %v698 = vpop.f32.mrb[0].mxu0
    %v699 = vadd.f32 %v606, %v698
    %v700 = vpop.f32.mrb[0].mxu0
    %v701 = vpop.f32.mrb[0].mxu0
    %v702 = vadd.f32 %v606, %v701
    %v703 = vpop.f32.mrb[0].mxu0
    %704 = vmatprep.mubr.bf16.mxu0 0
    %705 = vmatmul.mubr.bf16.gmra.mrb[0].mxu0 %v577
    %v706 = vpop.f32.mrb[0].mxu0
    %v707 = vadd.f32 %v606, %v706
    %v708 = vpop.f32.mrb[0].mxu0
    %v709 = vpop.f32.mrb[0].mxu0
    %v710 = vadd.f32 %v606, %v709
    %v711 = vpop.f32.mrb[0].mxu0
    %712 = vmatprep.mubr.bf16.mxu0 0
    %713 = vmatmul.mubr.bf16.gmra.mrb[0].mxu0 %v578
    %v714 = vpop.f32.mrb[0].mxu0
    %v715 = vadd.f32 %v606, %v714
    %v716 = vpop.f32.mrb[0].mxu0
    %v717 = vpop.f32.mrb[0].mxu0
    %v718 = vadd.f32 %v606, %v717
    %v719 = vpop.f32.mrb[0].mxu0
    %720 = vmatprep.mubr.bf16.mxu0 0
    %721 = vmatmul.mubr.bf16.gmra.mrb[0].mxu0 %v579
    %v722 = vpop.f32.mrb[0].mxu0
    %v723 = vadd.f32 %v606, %v722
    %v724 = vpop.f32.mrb[0].mxu0
    %v725 = vpop.f32.mrb[0].mxu0
    %v726 = vadd.f32 %v606, %v725
    %v727 = vpop.f32.mrb[0].mxu0
    %728 = vmatprep.mubr.bf16.mxu0 0
    %729 = vmatmul.mubr.bf16.gmra.mrb[0].mxu0 %v580
    %v730 = vpop.f32.mrb[0].mxu0
    %v731 = vadd.f32 %v606, %v730
    %v732 = vpop.f32.mrb[0].mxu0
    %v733 = vpop.f32.mrb[0].mxu0
    %v734 = vadd.f32 %v606, %v733
    %v735 = vpop.f32.mrb[0].mxu0
    %736 = vmatprep.mubr.bf16.mxu0 0
    %737 = vmatmul.mubr.bf16.gmra.mrb[0].mxu0 %v581
    %v738 = vpop.f32.mrb[0].mxu0
    %v739 = vadd.f32 %v606, %v738
    %v740 = vpop.f32.mrb[0].mxu0
    %v741 = vpop.f32.mrb[0].mxu0
    %v742 = vadd.f32 %v606, %v741
    %v743 = vpop.f32.mrb[0].mxu0
    %744 = vmatprep.mubr.bf16.mxu0 0
    %745 = vmatmul.mubr.bf16.gmra.mrb[0].mxu0 %v582
    %v746 = vpop.f32.mrb[0].mxu0
    %v747 = vadd.f32 %v606, %v746
    %v748 = vpop.f32.mrb[0].mxu0
    %v749 = vpop.f32.mrb[0].mxu0
    %v750 = vadd.f32 %v606, %v749
    %v751 = vpop.f32.mrb[0].mxu0
    %752 = vdwg.mxu0
    %v753 = vmax.f32 %v691, 0.0
    %v754 = vmax.f32 %v694, 0.0
    %v755 = vmax.f32 %v699, 0.0
    %v756 = vmax.f32 %v702, 0.0
    %v757 = vmax.f32 %v707, 0.0
    %v758 = vmax.f32 %v710, 0.0
    %v759 = vmax.f32 %v715, 0.0
    %v760 = vmax.f32 %v718, 0.0
    %v761 = vmax.f32 %v723, 0.0
    %v762 = vmax.f32 %v726, 0.0
    %v763 = vmax.f32 %v731, 0.0
    %v764 = vmax.f32 %v734, 0.0
    %v765 = vmax.f32 %v739, 0.0
    %v766 = vmax.f32 %v742, 0.0
    %v767 = vmax.f32 %v747, 0.0
    %v768 = vmax.f32 %v750, 0.0
    %v769 = vadd.f32 %v753, %v559
    %v770 = vadd.f32 %v754, %v560
    %v771 = vadd.f32 %v755, %v561
    %v772 = vadd.f32 %v756, %v562
    %v773 = vadd.f32 %v757, %v563
    %v774 = vadd.f32 %v758, %v564
    %v775 = vadd.f32 %v759, %v565
    %v776 = vadd.f32 %v760, %v566
    %v777 = vadd.f32 %v761, %v567
    %v778 = vadd.f32 %v762, %v568
    %v779 = vadd.f32 %v763, %v569
    %v780 = vadd.f32 %v764, %v570
    %v781 = vadd.f32 %v765, %v571
    %v782 = vadd.f32 %v766, %v572
    %v783 = vadd.f32 %v767, %v573
    %v784 = vadd.f32 %v768, %v574
    %v785 = vpack.c.bf16 %v770, %v769
    %v786 = vpack.c.bf16 %v772, %v771
    %v787 = vpack.c.bf16 %v774, %v773
    %v788 = vpack.c.bf16 %v776, %v775
    %v789 = vpack.c.bf16 %v778, %v777
    %v790 = vpack.c.bf16 %v780, %v779
    %v791 = vpack.c.bf16 %v782, %v781
    %v792 = vpack.c.bf16 %v784, %v783
    %v793 = vld [vmem:[#allocation11] sm:$0xf]
    %v794 = vld [vmem:[#allocation11 + $0x4] sm:$0xf]
    %v795 = vld [vmem:[#allocation11 + $0x8] sm:$0xf]
    %v796 = vld [vmem:[#allocation11 + $0xc] sm:$0xf]
    %v797 = vld [vmem:[#allocation11 + $0x10] sm:$0xf]
    %v798 = vld [vmem:[#allocation11 + $0x14] sm:$0xf]
    %v799 = vld [vmem:[#allocation11 + $0x18] sm:$0xf]
    %v800 = vld [vmem:[#allocation11 + $0x1c] sm:$0xf]
    %v801 = vld [vmem:[#allocation11 + $0x20] sm:$0xf]
    %v802 = vld [vmem:[#allocation11 + $0x24] sm:$0xf]
    %v803 = vld [vmem:[#allocation11 + $0x28] sm:$0xf]
    %v804 = vld [vmem:[#allocation11 + $0x2c] sm:$0xf]
    %v805 = vld [vmem:[#allocation11 + $0x30] sm:$0xf]
    %v806 = vld [vmem:[#allocation11 + $0x34] sm:$0xf]
    %v807 = vld [vmem:[#allocation11 + $0x38] sm:$0xf]
    %v808 = vld [vmem:[#allocation11 + $0x3c] sm:$0xf]
    %v809 = vld [vmem:[#allocation13] sm:$0x1]
    %v811 = vlaneseq
    %v812 = vshrl.u32 %v811, 7
    %v813 = vsub.s32 0, %v812
    %v814 = vrot.slane %v809, %v813
    %v832 = vunpack.c.l.b16 %v793
    %v833 = vunpack.c.l.b16 %v794
    %v834 = vunpack.c.l.b16 %v795
    %v835 = vunpack.c.l.b16 %v796
    %v836 = vunpack.c.l.b16 %v797
    %v837 = vunpack.c.l.b16 %v798
    %v838 = vunpack.c.l.b16 %v799
    %v839 = vunpack.c.l.b16 %v800
    %v840 = vunpack.c.l.b16 %v801
    %v841 = vunpack.c.l.b16 %v802
    %v842 = vunpack.c.l.b16 %v803
    %v843 = vunpack.c.l.b16 %v804
    %v844 = vunpack.c.l.b16 %v805
    %v845 = vunpack.c.l.b16 %v806
    %v846 = vunpack.c.l.b16 %v807
    %v847 = vunpack.c.l.b16 %v808
    %v848 = vpack.c.b16 %v833, %v832
    %v849 = vpack.c.b16 %v835, %v834
    %v850 = vpack.c.b16 %v837, %v836
    %v851 = vpack.c.b16 %v839, %v838
    %v852 = vpack.c.b16 %v841, %v840
    %v853 = vpack.c.b16 %v843, %v842
    %v854 = vpack.c.b16 %v845, %v844
    %v855 = vpack.c.b16 %v847, %v846
    %864 = vmatprep.subr.bf16.mxu0 0
    %865 = vmatpush1.bf16.msra.mxu0 %v848
    %866 = vmatprep.subr.bf16.mxu0 0
    %867 = vmatpush1.bf16.msra.mxu0 %v849
    %868 = vmatprep.subr.bf16.mxu0 0
    %869 = vmatpush1.bf16.msra.mxu0 %v850
    %870 = vmatprep.subr.bf16.mxu0 0
    %871 = vmatpush1.bf16.msra.mxu0 %v851
    %872 = vmatprep.subr.bf16.mxu0 0
    %873 = vmatpush1.bf16.msra.mxu0 %v852
    %874 = vmatprep.subr.bf16.mxu0 0
    %875 = vmatpush1.bf16.msra.mxu0 %v853
    %876 = vmatprep.subr.bf16.mxu0 0
    %877 = vmatpush1.bf16.msra.mxu0 %v854
    %878 = vmatprep.subr.bf16.mxu0 0
    %879 = vmatpush1.bf16.msra.mxu0 %v855
    %880 = vmatprep.subr.bf16.mxu0 0
    %881 = vmatpush1.bf16.msra.mxu0 0
    %882 = vmatprep.subr.bf16.mxu0 0
    %883 = vmatpush1.bf16.msra.mxu0 0
    %884 = vmatprep.subr.bf16.mxu0 0
    %885 = vmatpush1.bf16.msra.mxu0 0
    %886 = vmatprep.subr.bf16.mxu0 0
    %887 = vmatpush1.bf16.msra.mxu0 0
    %888 = vmatprep.subr.bf16.mxu0 0
    %889 = vmatpush1.bf16.msra.mxu0 0
    %890 = vmatprep.subr.bf16.mxu0 0
    %891 = vmatpush1.bf16.msra.mxu0 0
    %892 = vmatprep.subr.bf16.mxu0 0
    %893 = vmatpush1.bf16.msra.mxu0 0
    %894 = vmatprep.subr.bf16.mxu0 0
    %895 = vmatpush1.bf16.msra.mxu0 0
    %896 = vmatprep.mubr.bf16.mxu0 0
    %897 = vmatmul.mubr.bf16.gmra.mrb[0].mxu0 %v785
    %v898 = vpop.f32.mrb[0].mxu0
    %v899 = vadd.f32 %v814, %v898
    %v900 = vpop.f32.mrb[0].mxu0
    %v901 = vpop.f32.mrb[0].mxu0
    %v902 = vadd.f32 %v814, %v901
    %v903 = vpop.f32.mrb[0].mxu0
    %904 = vmatprep.mubr.bf16.mxu0 0
    %905 = vmatmul.mubr.bf16.gmra.mrb[0].mxu0 %v786
    %v906 = vpop.f32.mrb[0].mxu0
    %v907 = vadd.f32 %v814, %v906
    %v908 = vpop.f32.mrb[0].mxu0
    %v909 = vpop.f32.mrb[0].mxu0
    %v910 = vadd.f32 %v814, %v909
    %v911 = vpop.f32.mrb[0].mxu0
    %912 = vmatprep.mubr.bf16.mxu0 0
    %913 = vmatmul.mubr.bf16.gmra.mrb[0].mxu0 %v787
    %v914 = vpop.f32.mrb[0].mxu0
    %v915 = vadd.f32 %v814, %v914
    %v916 = vpop.f32.mrb[0].mxu0
    %v917 = vpop.f32.mrb[0].mxu0
    %v918 = vadd.f32 %v814, %v917
    %v919 = vpop.f32.mrb[0].mxu0
    %920 = vmatprep.mubr.bf16.mxu0 0
    %921 = vmatmul.mubr.bf16.gmra.mrb[0].mxu0 %v788
    %v922 = vpop.f32.mrb[0].mxu0
    %v923 = vadd.f32 %v814, %v922
    %v924 = vpop.f32.mrb[0].mxu0
    %v925 = vpop.f32.mrb[0].mxu0
    %v926 = vadd.f32 %v814, %v925
    %v927 = vpop.f32.mrb[0].mxu0
    %928 = vmatprep.mubr.bf16.mxu0 0
    %929 = vmatmul.mubr.bf16.gmra.mrb[0].mxu0 %v789
    %v930 = vpop.f32.mrb[0].mxu0
    %v931 = vadd.f32 %v814, %v930
    %v932 = vpop.f32.mrb[0].mxu0
    %v933 = vpop.f32.mrb[0].mxu0
    %v934 = vadd.f32 %v814, %v933
    %v935 = vpop.f32.mrb[0].mxu0
    %936 = vmatprep.mubr.bf16.mxu0 0
    %937 = vmatmul.mubr.bf16.gmra.mrb[0].mxu0 %v790
    %v938 = vpop.f32.mrb[0].mxu0
    %v939 = vadd.f32 %v814, %v938
    %v940 = vpop.f32.mrb[0].mxu0
    %v941 = vpop.f32.mrb[0].mxu0
    %v942 = vadd.f32 %v814, %v941
    %v943 = vpop.f32.mrb[0].mxu0
    %944 = vmatprep.mubr.bf16.mxu0 0
    %945 = vmatmul.mubr.bf16.gmra.mrb[0].mxu0 %v791
    %v946 = vpop.f32.mrb[0].mxu0
    %v947 = vadd.f32 %v814, %v946
    %v948 = vpop.f32.mrb[0].mxu0
    %v949 = vpop.f32.mrb[0].mxu0
    %v950 = vadd.f32 %v814, %v949
    %v951 = vpop.f32.mrb[0].mxu0
    %952 = vmatprep.mubr.bf16.mxu0 0
    %953 = vmatmul.mubr.bf16.gmra.mrb[0].mxu0 %v792
    %v954 = vpop.f32.mrb[0].mxu0
    %v955 = vadd.f32 %v814, %v954
    %v956 = vpop.f32.mrb[0].mxu0
    %v957 = vpop.f32.mrb[0].mxu0
    %v958 = vadd.f32 %v814, %v957
    %v959 = vpop.f32.mrb[0].mxu0
    %960 = vdwg.mxu0
    %961 = vst [vmem:[#allocation14] sm:$0xff] %v899
    %962 = vst [vmem:[#allocation14 + $0x8] sm:$0xff] %v902
    %963 = vst [vmem:[#allocation14 + $0x10] sm:$0xff] %v907
    %964 = vst [vmem:[#allocation14 + $0x18] sm:$0xff] %v910
    %965 = vst [vmem:[#allocation14 + $0x20] sm:$0xff] %v915
    %966 = vst [vmem:[#allocation14 + $0x28] sm:$0xff] %v918
    %967 = vst [vmem:[#allocation14 + $0x30] sm:$0xff] %v923
    %968 = vst [vmem:[#allocation14 + $0x38] sm:$0xff] %v926
    %969 = vst [vmem:[#allocation14 + $0x40] sm:$0xff] %v931
    %970 = vst [vmem:[#allocation14 + $0x48] sm:$0xff] %v934
    %971 = vst [vmem:[#allocation14 + $0x50] sm:$0xff] %v939
    %972 = vst [vmem:[#allocation14 + $0x58] sm:$0xff] %v942
    %973 = vst [vmem:[#allocation14 + $0x60] sm:$0xff] %v947
    %974 = vst [vmem:[#allocation14 + $0x68] sm:$0xff] %v950
    %975 = vst [vmem:[#allocation14 + $0x70] sm:$0xff] %v955
    %976 = vst [vmem:[#allocation14 + $0x78] sm:$0xff] %v958
    // Predicated region
    $region58: #{tpu_custom_call.1} parent=1 // pred_check
      _
    $region59: #{tpu_custom_call.1} parent=1 // pred_check_branch
      %978 = sbr.rel (0) target = $region61
    $region60: #{tpu_custom_call.1} parent=1 // pred_region
      %s980 = ssub.s32 2048, 2048
      %981 = vsyncadd [#allocation4], %s980
      %s982 = sshll.u32 [#allocation14], 4
      %s983 = int_to_ptr.vmem [resolvable:$true] %s982
      %988 = dma.vmem_to_hbm [thread:$0]  %s983, 2048, %s7, [#allocation4], 128, 128, 8
    $region61: #{tpu_custom_call.1} parent=1 // pred_fallthru
      _
    // Predicated region
    $region62: #{tpu_custom_call.1} parent=1 // pred_check
      _
    $region63: #{tpu_custom_call.1} parent=1 // pred_check_branch
      %990 = sbr.rel (0) target = $region65
    $region64: #{tpu_custom_call.1} parent=1 // pred_region
      %991 = dma.done [#allocation4], 2048
    $region65: #{tpu_custom_call.1} parent=1 // pred_fallthru
      _
    %992 = vsyncpa [#allocation3], 1
    %993 = vsyncpa [#allocation6], 1
    %994 = vsyncpa [#allocation9], 1
    %995 = vsyncpa [#allocation12], 1
    %996 = vsyncpa [#allocation4], 1

</llo_original>
